<compile_context>
chip_gen: v7x
topology: tpu7x:2x2x1
jax: 0.10.0
libtpu: 0.0.40
codegen_flags: <defaults>
</compile_context>

<pallas_src>
import jax
import jax.numpy as jnp
from jax.experimental import pallas as pl
from jax.experimental.pallas import tpu as pltpu

LANE = 128            # vreg lane width: batch maps onto the fast (lane) axis
SUBL = 16             # sublane tile granularity (multiple of 8; 16 keeps bf16 packing legal)
_FAST_PATH_MAX_B = 4096   # below this, fused XLA beats kernel launch + layout copies


def _round_up(n, m):
    return ((n + m - 1) // m) * m


def _fc_sigmoid_kernel(x_ref, w_ref, b_ref, o_ref):
    # x_ref: (IN, S, 128) VMEM, batch sublane+lane dense
    # w_ref: (IN,)   SMEM scalars
    # b_ref: (1,)    SMEM scalar
    # o_ref: (S, 128) VMEM
    in_f = x_ref.shape[0]
    # Three scalar*slab FMAs on the VPU over full (S,128) vregs.
    z = w_ref[0] * x_ref[0].astype(jnp.float32)
    for k in range(1, in_f):
        z = z + w_ref[k] * x_ref[k].astype(jnp.float32)
    z = z + b_ref[0]
    # sigmoid(z) == 0.5*tanh(0.5*z) + 0.5 : tanh goes to the (otherwise idle)
    # EUP slot instead of a VALU divide.
    o_ref[...] = (0.5 * jnp.tanh(0.5 * z) + 0.5).astype(o_ref.dtype)


def classification_net_forward(x, weight, bias, *, tile_rows=512, force_kernel=False):
    """Linear(3 -> 1) + sigmoid.

    x: (B, 3); weight: (1, 3) (PyTorch layout); bias: (1,). Returns (B, 1) f32.
    """
    B, in_f = x.shape
    out_f, w_in = weight.shape
    assert out_f == 1 and w_in == in_f, "ClassificationNet is Linear(3, 1)"

    # --- small-batch fast path: let XLA fuse it -----------------------------
    if B <= _FAST_PATH_MAX_B and not force_kernel:
        return jax.nn.sigmoid(
            x.astype(jnp.float32) @ weight.astype(jnp.float32).T
            + bias.astype(jnp.float32))

    # --- tile sizing (rows of 128 samples) ----------------------------------
    rows = pl.cdiv(B, LANE)
    rows_min = _round_up(rows, SUBL)
    if rows_min > tile_rows:
        s = tile_rows                                   # large B: >= 2 grid steps
    elif rows_min >= 2 * SUBL and rows_min * LANE >= 2 * _FAST_PATH_MAX_B:
        s = _round_up(pl.cdiv(rows_min, 2), SUBL)       # split across 2 TCs (v7x)
    else:
        s = rows_min                                    # single step
    n_steps = pl.cdiv(rows_min, s)
    rows_pad = n_steps * s
    b_pad = rows_pad * LANE
    # Per-step VMEM (double buffered): 2*(in_f+1)*s*128*4 B  -> ~2 MiB at s=512,
    # comfortably under v7x's 32 MiB default scoped VMEM.

    # --- wrapper-side layout plumbing ----------------------------------------
    # TODO(synk): ideally the producer emits feature-major (in_f, rows, 128)
    # activations directly; this pad+transpose is an extra HBM round trip.
    x_dt = x if x.dtype in (jnp.float32, jnp.bfloat16) else x.astype(jnp.float32)
    x_pad = jnp.pad(x_dt, ((0, b_pad - B), (0, 0)))          # (b_pad, in_f)
    x_t = x_pad.T.reshape(in_f, rows_pad, LANE)              # (in_f, rows_pad, 128)
    w_flat = weight.reshape(in_f).astype(jnp.float32)        # (in_f,) -> SMEM
    b_flat = bias.reshape(out_f).astype(jnp.float32)         # (1,)    -> SMEM

    out = pl.pallas_call(
        _fc_sigmoid_kernel,
        out_shape=jax.ShapeDtypeStruct((rows_pad, LANE), jnp.float32),
        grid=(n_steps,),
        in_specs=[
            pl.BlockSpec((in_f, s, LANE), lambda i: (0, i, 0)),
            pl.BlockSpec(memory_space=pltpu.MemorySpace.SMEM),
            pl.BlockSpec(memory_space=pltpu.MemorySpace.SMEM),
        ],
        out_specs=pl.BlockSpec((s, LANE), lambda i: (i, 0)),
        compiler_params=pltpu.CompilerParams(
            dimension_semantics=("parallel",),
        ),
    )(x_t, w_flat, b_flat)

    # Drop batch padding, restore PyTorch output shape (B, 1).
    return out.reshape(b_pad)[:B].reshape(B, out_f)


if __name__ == "__main__":
    key = jax.random.PRNGKey(0)
    k_x, k_w, k_b, k_x2 = jax.random.split(key, 4)

    # Shapes implied by the module: batch=8, in_features=3, out_features=1
    B, IN, OUT = 8, 3, 1
    x = jax.random.normal(k_x, (B, IN), dtype=jnp.float32)

    # Deterministic params (mimic nn.Linear uniform(-1/sqrt(IN), 1/sqrt(IN)))
    bound = 1.0 / jnp.sqrt(jnp.float32(IN))
    weight = jax.random.uniform(k_w, (OUT, IN), minval=-bound, maxval=bound,
                                dtype=jnp.float32)
    bias = jax.random.uniform(k_b, (OUT,), minval=-bound, maxval=bound,
                              dtype=jnp.float32)

    # 1) Module-shape path (B=8): small-batch fused-XLA fast path.
    out_small = jax.block_until_ready(classification_net_forward(x, weight, bias))
    ref_small = jax.nn.sigmoid(x @ weight.T + bias)
    assert out_small.shape == (B, OUT)
    assert jnp.allclose(out_small, ref_small, atol=1e-5), "fast-path mismatch"

    # 2) Pallas kernel path (forced): ragged batch exercising padding + (S,128) slabs.
    B2 = 333
    x2 = jax.random.normal(k_x2, (B2, IN), dtype=jnp.float32)
    out_k = jax.block_until_ready(
        classification_net_forward(x2, weight, bias, force_kernel=True))
    ref_k = jax.nn.sigmoid(x2 @ weight.T + bias)
    assert out_k.shape == (B2, OUT)
    assert jnp.allclose(out_k, ref_k, atol=1e-5), "kernel-path mismatch vs reference"

    print("KERNEL_OK")
</pallas_src>

<mosaic_0001>
module attributes {stable_mosaic.version = 11 : i64} {
  func.func @_fc_sigmoid_kernel(%arg0: i32, %arg1: memref<3x16x128xf32, #tpu.memory_space<vmem>>, %arg2: memref<3xf32, #tpu.memory_space<smem>>, %arg3: memref<1xf32, #tpu.memory_space<smem>>, %arg4: memref<16x128xf32, #tpu.memory_space<vmem>>) attributes {dimension_semantics = [#tpu.dimension_semantics<parallel>], iteration_bounds = array<i64: 1>, scalar_prefetch = 0 : i64, scratch_operands = 0 : i64, tpu.core_type = #tpu.core_type<tc>, window_params = [{transform_indices = @transform_0, window_bounds = array<i64: 3, 16, 128>}, {transform_indices = @transform_1, window_bounds = array<i64: 3>}, {transform_indices = @transform_2, window_bounds = array<i64: 1>}, {transform_indices = @transform_3, window_bounds = array<i64: 16, 128>}]} {
    %c0 = arith.constant 0 : index
    %0 = memref.load %arg2[%c0] : memref<3xf32, #tpu.memory_space<smem>>
    %c0_0 = arith.constant 0 : index
    %c0_1 = arith.constant 0 : index
    %c0_2 = arith.constant 0 : index
    %1 = vector.load %arg1[%c0_0, %c0_1, %c0_2] : memref<3x16x128xf32, #tpu.memory_space<vmem>>, vector<1x16x128xf32>
    %2 = vector.shape_cast %1 : vector<1x16x128xf32> to vector<16x128xf32>
    %3 = vector.broadcast %0 : f32 to vector<16x128xf32>
    %4 = arith.mulf %3, %2 : vector<16x128xf32>
    %c1 = arith.constant 1 : index
    %5 = memref.load %arg2[%c1] : memref<3xf32, #tpu.memory_space<smem>>
    %c1_3 = arith.constant 1 : index
    %c0_4 = arith.constant 0 : index
    %c0_5 = arith.constant 0 : index
    %6 = vector.load %arg1[%c1_3, %c0_4, %c0_5] : memref<3x16x128xf32, #tpu.memory_space<vmem>>, vector<1x16x128xf32>
    %7 = vector.shape_cast %6 : vector<1x16x128xf32> to vector<16x128xf32>
    %8 = vector.broadcast %5 : f32 to vector<16x128xf32>
    %9 = arith.mulf %8, %7 : vector<16x128xf32>
    %10 = arith.addf %4, %9 : vector<16x128xf32>
    %c2 = arith.constant 2 : index
    %11 = memref.load %arg2[%c2] : memref<3xf32, #tpu.memory_space<smem>>
    %c2_6 = arith.constant 2 : index
    %c0_7 = arith.constant 0 : index
    %c0_8 = arith.constant 0 : index
    %12 = vector.load %arg1[%c2_6, %c0_7, %c0_8] : memref<3x16x128xf32, #tpu.memory_space<vmem>>, vector<1x16x128xf32>
    %13 = vector.shape_cast %12 : vector<1x16x128xf32> to vector<16x128xf32>
    %14 = vector.broadcast %11 : f32 to vector<16x128xf32>
    %15 = arith.mulf %14, %13 : vector<16x128xf32>
    %16 = arith.addf %10, %15 : vector<16x128xf32>
    %c0_9 = arith.constant 0 : index
    %17 = memref.load %arg3[%c0_9] : memref<1xf32, #tpu.memory_space<smem>>
    %18 = vector.broadcast %17 : f32 to vector<16x128xf32>
    %19 = arith.addf %16, %18 : vector<16x128xf32>
    %cst = arith.constant 5.000000e-01 : f32
    %20 = vector.broadcast %cst : f32 to vector<16x128xf32>
    %21 = arith.mulf %20, %19 : vector<16x128xf32>
    %22 = math.tanh %21 : vector<16x128xf32>
    %cst_10 = arith.constant 5.000000e-01 : f32
    %23 = vector.broadcast %cst_10 : f32 to vector<16x128xf32>
    %24 = arith.mulf %23, %22 : vector<16x128xf32>
    %cst_11 = arith.constant 5.000000e-01 : f32
    %25 = vector.broadcast %cst_11 : f32 to vector<16x128xf32>
    %26 = arith.addf %24, %25 : vector<16x128xf32>
    %c0_12 = arith.constant 0 : index
    %c0_13 = arith.constant 0 : index
    %27 = vector.load %arg4[%c0_12, %c0_13] : memref<16x128xf32, #tpu.memory_space<vmem>>, vector<16x128xf32>
    tpu.vector_store %arg4[%c0_12, %c0_13], %26 {strides = array<i32>} : memref<16x128xf32, #tpu.memory_space<vmem>>, vector<16x128xf32>,
    return
  }
  func.func @transform_0(%arg0: i32) -> (i32, i32, i32) {
    %c0_i32 = arith.constant 0 : i32
    %c0_i32_0 = arith.constant 0 : i32
    %c0_i32_1 = arith.constant 0 : i32
    return %c0_i32, %arg0, %c0_i32_0 : i32, i32, i32
  }
  func.func @transform_1(%arg0: i32) -> i32 {
    %c0_i32 = arith.constant 0 : i32
    %c0_i32_0 = arith.constant 0 : i32
    return %c0_i32 : i32
  }
  func.func @transform_2(%arg0: i32) -> i32 {
    %c0_i32 = arith.constant 0 : i32
    %c0_i32_0 = arith.constant 0 : i32
    return %c0_i32 : i32
  }
  func.func @transform_3(%arg0: i32) -> (i32, i32) {
    %c0_i32 = arith.constant 0 : i32
    %c0_i32_0 = arith.constant 0 : i32
    return %arg0, %c0_i32 : i32, i32
  }
}

</mosaic_0001>

<llo_original>
// kernel: tpu_custom_call.1
$region0: #{tpu_custom_call.1}
  #allocation0 [shape = 'u32[]', space=smem, size = 0x4, offset = 0x4, fixed_abs, tag = 'smem constant byte address 0x4 - core index']
  #allocation1 [shape = 'u32[144,128]{1,0:T(1,128)}', space=vmem, size = 0x12000, scoped, tag = 'internal scratch']
  #allocation2 [shape = 'f32[1]{0:T(128)S(6)}', space=smem, size = 0x200, scoped, tag = 'scoped memory for tpu_custom_call.1']
  %s0 = inlined_call_operand.hbm [shape: f32[3,16,128], index: 0, kind: input, shape index: {}]
  %s1 = inlined_call_operand.vmem [shape: f32[3], index: 1, kind: input, shape index: {}]
  %s2 = inlined_call_operand.<no memory space> [shape: f32[1], index: 2, kind: input, shape index: {}]
  %s3 = inlined_call_operand.hbm [shape: f32[16,128], index: 3, kind: output, shape index: {}]
  %s4 = sld [smem:[#allocation0]]
  $region30: #{tpu_custom_call.1} parent=0
    _
  %s6 = ssub.s32 1, %s4
  %s7 = scalar_select 0, %s6, %s4
  %8 = sst [smem:[#allocation2]] %s2
  $region1: #{tpu_custom_call.1} parent=0
    #allocation3 [shape = 'u8[24576]{0}', space=vmem, size = 0x6000, scoped, tag = 'input window, operand 0, single buffered']
    #allocation4 [shape = 's32[1]{0}', space=sflag, size = 0x4, scoped, tag = 'scoped memory for tpu_custom_call.1']
    #allocation5 [shape = 's32[1]{0}', space=sflag, size = 0x4, scoped, tag = 'scoped memory for tpu_custom_call.1']
    #allocation6 [shape = 's32[1]{0}', space=sflag, size = 0x4, scoped, tag = 'scoped memory for tpu_custom_call.1']
    #allocation7 [shape = 'u8[512]{0}', space=smem, size = 0x200, scoped, tag = 'input window, operand 1, single buffered']
    #allocation8 [shape = 'u8[8192]{0}', space=vmem, size = 0x2000, scoped, tag = 'output window, operand 0, single buffered']
    %9 = vsyncpa [#allocation4], 0
    %10 = vsyncpa [#allocation6], 0
    %11 = vsyncpa [#allocation5], 0
    // Predicated region
    $region2: #{tpu_custom_call.1} parent=1 // pred_check
      _
    $region3: #{tpu_custom_call.1} parent=1 // pred_check_branch
      %13 = sbr.rel (0) target = $region5
    $region4: #{tpu_custom_call.1} parent=1 // pred_region
      %s15 = ssub.s32 768, 768
      %16 = vsyncadd [#allocation4], %s15
      %s17 = sshll.u32 [#allocation3], 4
      %s18 = int_to_ptr.vmem [resolvable:$true] %s17
      %23 = dma.hbm_to_vmem [thread:$0]  %s0, 768, %s18, [#allocation4], 128, 128, 8
    $region5: #{tpu_custom_call.1} parent=1 // pred_fallthru
      _
    // Predicated region
    $region6: #{tpu_custom_call.1} parent=1 // pred_check
      _
    $region7: #{tpu_custom_call.1} parent=1 // pred_check_branch
      %25 = sbr.rel (0) target = $region9
    $region8: #{tpu_custom_call.1} parent=1 // pred_region
      %s27 = ssub.s32 16, 16
      %28 = vsyncadd [#allocation6], %s27
      %s30 = sshll.u32 %s1, 4
      %s31 = int_to_ptr.vmem [resolvable:$true] %s30
      %33 = dma.vmem_to_smem %s31, 16, [#allocation7], [#allocation6]
    $region9: #{tpu_custom_call.1} parent=1 // pred_fallthru
      _
    // Predicated region
    $region10: #{tpu_custom_call.1} parent=1 // pred_check
      _
    $region11: #{tpu_custom_call.1} parent=1 // pred_check_branch
      %35 = sbr.rel (0) target = $region13
    $region12: #{tpu_custom_call.1} parent=1 // pred_region
      _
    $region13: #{tpu_custom_call.1} parent=1 // pred_fallthru
      _
    // Predicated region
    $region14: #{tpu_custom_call.1} parent=1 // pred_check
      _
    $region15: #{tpu_custom_call.1} parent=1 // pred_check_branch
      %37 = sbr.rel (0) target = $region17
    $region16: #{tpu_custom_call.1} parent=1 // pred_region
      %38 = dma.done [#allocation4], 768
    $region17: #{tpu_custom_call.1} parent=1 // pred_fallthru
      _
    // Predicated region
    $region18: #{tpu_custom_call.1} parent=1 // pred_check
      _
    $region19: #{tpu_custom_call.1} parent=1 // pred_check_branch
      %40 = sbr.rel (0) target = $region21
    $region20: #{tpu_custom_call.1} parent=1 // pred_region
      %41 = dma.done [#allocation6], 16
    $region21: #{tpu_custom_call.1} parent=1 // pred_fallthru
      _
    %42 = sfence
    %s43 = sld [smem:[#allocation7]]
    %v44 = vld [vmem:[#allocation3] sm:$0xff]
    %v45 = vld [vmem:[#allocation3 + $0x8] sm:$0xff]
    %v46 = vstv %s43
    %v47 = vmul.f32 %v46, %v44
    %v48 = vmul.f32 %v46, %v45
    %s49 = sld [smem:[#allocation7 + $0x1]]
    %s50 = scalar_lea.vmem [#allocation3], 16
    %v51 = vld [vmem:[%s50] sm:$0xff]
    %v52 = vld [vmem:[%s50 + $0x8] sm:$0xff]
    %v53 = vstv %s49
    %v54 = vmul.f32 %v53, %v51
    %v55 = vmul.f32 %v53, %v52
    %v56 = vadd.f32 %v47, %v54
    %v57 = vadd.f32 %v48, %v55
    %s58 = sld [smem:[#allocation7 + $0x2]]
    %s59 = scalar_lea.vmem [#allocation3], 32
    %v60 = vld [vmem:[%s59] sm:$0xff]
    %v61 = vld [vmem:[%s59 + $0x8] sm:$0xff]
    %v62 = vstv %s58
    %v63 = vmul.f32 %v62, %v60
    %v64 = vmul.f32 %v62, %v61
    %v65 = vadd.f32 %v56, %v63
    %v66 = vadd.f32 %v57, %v64
    %s67 = sld [smem:[#allocation2]]
    %v68 = vstv %s67
    %v69 = vadd.f32 %v65, %v68
    %v70 = vadd.f32 %v66, %v68
    %v71 = vmul.f32 %v69, 0.5
    %v72 = vmul.f32 %v70, 0.5
    %v73 = vtanh.pop %v71
    %v74 = vtanh.pop %v72
    %v75 = vmul.f32 %v73, 0.5
    %v76 = vmul.f32 %v74, 0.5
    %v77 = vadd.f32 %v75, 0.5
    %v78 = vadd.f32 %v76, 0.5
    %79 = vst [vmem:[#allocation8] sm:$0xff] %v77
    %80 = vst [vmem:[#allocation8 + $0x8] sm:$0xff] %v78
    // Predicated region
    $region22: #{tpu_custom_call.1} parent=1 // pred_check
      _
    $region23: #{tpu_custom_call.1} parent=1 // pred_check_branch
      %82 = sbr.rel (0) target = $region25
    $region24: #{tpu_custom_call.1} parent=1 // pred_region
      %s84 = ssub.s32 256, 256
      %85 = vsyncadd [#allocation5], %s84
      %s86 = sshll.u32 [#allocation8], 4
      %s87 = int_to_ptr.vmem [resolvable:$true] %s86
      %92 = dma.vmem_to_hbm [thread:$0]  %s87, 256, %s3, [#allocation5], 128, 128, 8
    $region25: #{tpu_custom_call.1} parent=1 // pred_fallthru
      _
    // Predicated region
    $region26: #{tpu_custom_call.1} parent=1 // pred_check
      _
    $region27: #{tpu_custom_call.1} parent=1 // pred_check_branch
      %94 = sbr.rel (0) target = $region29
    $region28: #{tpu_custom_call.1} parent=1 // pred_region
      %95 = dma.done [#allocation5], 256
    $region29: #{tpu_custom_call.1} parent=1 // pred_fallthru
      _
    %96 = vsyncpa [#allocation4], 1
    %97 = vsyncpa [#allocation5], 1
    %98 = vsyncpa [#allocation6], 1

</llo_original>
